<compile_context>
chip_gen: v7x
topology: tpu7x:2x2x1
jax: 0.10.0
libtpu: 0.0.40
codegen_flags: <defaults>
</compile_context>

<pallas_src>
import functools
import math

import jax
import jax.numpy as jnp
from jax import lax
from jax.experimental import pallas as pl
from jax.experimental.pallas import tpu as pltpu


def _pick_q_tile(n):
    """Query-tile size: bound vreg/VMEM pressure of the (TQ, LK) scores."""
    for t in (512, 256, 128):
        if n % t == 0:
            return t
    return n  # small sequences: one tile == full sequence


def _linformer_kernel(e_ref, mask_ref, q_ref, k_ref, v_ref, o_ref,
                      em_ref, kp_ref, vp_ref, *, scale):
    # Block shapes per grid step (b, h, t):
    #   e_ref:    (LK, N)   shared projection, resident across the whole grid
    #   mask_ref: (1, N)    per-batch padding mask
    #   q_ref:    (TQ, D)   query tile          (b, h, t squeezed/blocked)
    #   k_ref:    (N, D)    full keys for head  (resident across t)
    #   v_ref:    (N, D)    full values for head
    #   o_ref:    (TQ, D)
    # Scratch:
    #   em_ref:   (LK, N)   E * mask          (recomputed once per batch)
    #   kp_ref:   (LK, D)   scaled projected K (recomputed once per head)
    #   vp_ref:   (LK, D)   projected V
    h = pl.program_id(1)
    t = pl.program_id(2)

    # --- once per batch: fold the padding mask into E (E @ diag(m) == (E*m)).
    @pl.when(jnp.logical_and(h == 0, t == 0))
    def _():
        em_ref[...] = e_ref[...] * mask_ref[...].astype(e_ref.dtype)

    # --- once per (batch, head): project K / V down to LK landmark rows.
    #     1/sqrt(head_dim) is folded into K' (LK*D elements, not N*LK scores).
    @pl.when(t == 0)
    def _():
        e_m = em_ref[...]
        kp = jnp.dot(e_m, k_ref[...], preferred_element_type=jnp.float32)
        vp = jnp.dot(e_m, v_ref[...], preferred_element_type=jnp.float32)
        kp_ref[...] = (kp * scale).astype(kp_ref.dtype)
        vp_ref[...] = vp.astype(vp_ref.dtype)

    # --- per query tile: attention against the projected keys / values.
    # Contract the last axes directly (no k_proj.T materialized).
    scores = lax.dot_general(
        q_ref[...], kp_ref[...],
        dimension_numbers=(((1,), (1,)), ((), ())),
        preferred_element_type=jnp.float32)                    # (TQ, LK) f32

    s_max = jnp.max(scores, axis=-1, keepdims=True)
    p = jnp.exp(scores - s_max)
    denom = jnp.sum(p, axis=-1, keepdims=True)
    attn = p * pl.reciprocal(denom, approx=True)               # EUP slot

    out = jnp.dot(attn.astype(vp_ref.dtype), vp_ref[...],
                  preferred_element_type=jnp.float32)          # (TQ, D)
    o_ref[...] = out.astype(o_ref.dtype)


def linformer_self_attention(Q, K, V, mask, E, *, head_dim):
    """Q, K, V: [B, H, N, D]; mask: [B, N]; E: [LK, N]. Returns [B, H, N, D]."""
    B, H, N, D = Q.shape
    LK, N_e = E.shape
    assert N_e == N
    assert mask.shape == (B, N)

    TQ = _pick_q_tile(N)
    NT = N // TQ
    scale = 1.0 / math.sqrt(head_dim)
    kernel = functools.partial(_linformer_kernel, scale=scale)

    # Mask as [B, 1, N] so the per-step block (1, N) equals the full trailing dims.
    mask3 = mask.reshape(B, 1, N)

    qo_spec = pl.BlockSpec((None, None, TQ, D), lambda b, h, t: (b, h, t, 0))
    kv_spec = pl.BlockSpec((None, None, N, D), lambda b, h, t: (b, h, 0, 0))

    # TODO(synk): for realistic sizes (D=64, H>=4) fuse heads into the lane
    # dim ([B, N, H*D] view) so projection matmuls / output stores are
    # lane-dense; skipped here since the [B,H,N,D] input layout would need a
    # wrapper-side transpose (extra HBM pass).
    return pl.pallas_call(
        kernel,
        out_shape=jax.ShapeDtypeStruct((B, H, N, D), Q.dtype),
        grid_spec=pltpu.PrefetchScalarGridSpec(
            num_scalar_prefetch=0,
            # Batch axis is parallel (megacore / v7x 2-TC split); head and
            # query-tile axes carry VMEM-scratch state -> "arbitrary".
            grid=(B, H, NT),
            in_specs=[
                pl.BlockSpec((LK, N), lambda b, h, t: (0, 0)),          # E
                pl.BlockSpec((None, 1, N), lambda b, h, t: (b, 0, 0)),  # mask
                qo_spec,                                                # Q
                kv_spec,                                                # K
                kv_spec,                                                # V
            ],
            out_specs=qo_spec,
            scratch_shapes=[
                pltpu.VMEM((LK, N), E.dtype),   # E * mask   (per batch)
                pltpu.VMEM((LK, D), Q.dtype),   # scaled K'  (per head)
                pltpu.VMEM((LK, D), Q.dtype),   # V'         (per head)
            ],
        ),
        compiler_params=pltpu.CompilerParams(
            dimension_semantics=("parallel", "arbitrary", "arbitrary"),
            # Explicit budget (fits v7x's 64 MiB VMEM, above the 32 MiB default).
            vmem_limit_bytes=64 * 1024 * 1024,
        ),
    )(E, mask3, Q, K, V)


def _reference(Q, K, V, mask, E, head_dim):
    m = mask[:, None, :, None]
    Kp = jnp.einsum("kn,bhnd->bhkd", E, K * m)
    Vp = jnp.einsum("kn,bhnd->bhkd", E, V * m)
    dot = jnp.einsum("bhnd,bhkd->bhnk", Q, Kp) / math.sqrt(head_dim)
    attn = jax.nn.softmax(dot, axis=-1)
    return jnp.einsum("bhnk,bhkd->bhnd", attn, Vp)


if __name__ == "__main__":
    # Config mirrors the module: num_head, head_dim, linformer_k, max_seq_len.
    B, H, N, D, LK = 2, 2, 16, 32, 8

    key = jax.random.PRNGKey(0)
    k_q, k_k, k_v, k_e, k_m = jax.random.split(key, 5)

    Q = jax.random.normal(k_q, (B, H, N, D), dtype=jnp.float32)
    K = jax.random.normal(k_k, (B, H, N, D), dtype=jnp.float32)
    V = jax.random.normal(k_v, (B, H, N, D), dtype=jnp.float32)
    # Shared projection matrix: normal(std=0.02), matching nn.init.normal_.
    E = 0.02 * jax.random.normal(k_e, (LK, N), dtype=jnp.float32)
    # Binary attention mask [B, N] (1 = keep, 0 = pad).
    mask = (jax.random.uniform(k_m, (B, N)) > 0.2).astype(jnp.float32)

    out = linformer_self_attention(Q, K, V, mask, E, head_dim=D)
    out = jax.block_until_ready(out)

    ref = _reference(Q, K, V, mask, E, D)
    assert out.shape == (B, H, N, D)
    # Slightly relaxed tolerance: softmax denominator uses the EUP approximate
    # reciprocal (pl.reciprocal(approx=True)).
    assert jnp.allclose(out, ref, atol=2e-3, rtol=2e-3), "mismatch vs reference"

    print("KERNEL_OK")
</pallas_src>

<mosaic_0001>
module attributes {stable_mosaic.version = 11 : i64} {
  func.func @_linformer_kernel(%arg0: i32, %arg1: i32, %arg2: i32, %arg3: memref<8x16xf32, #tpu.memory_space<vmem>>, %arg4: memref<1x1x16xf32, #tpu.memory_space<vmem>>, %arg5: memref<1x1x16x32xf32, #tpu.memory_space<vmem>>, %arg6: memref<1x1x16x32xf32, #tpu.memory_space<vmem>>, %arg7: memref<1x1x16x32xf32, #tpu.memory_space<vmem>>, %arg8: memref<1x1x16x32xf32, #tpu.memory_space<vmem>>, %arg9: memref<8x16xf32, #tpu.memory_space<vmem>>, %arg10: memref<8x32xf32, #tpu.memory_space<vmem>>, %arg11: memref<8x32xf32, #tpu.memory_space<vmem>>) attributes {dimension_semantics = [#tpu.dimension_semantics<parallel>, #tpu.dimension_semantics<arbitrary>, #tpu.dimension_semantics<arbitrary>], iteration_bounds = array<i64: 2, 2, 1>, scalar_prefetch = 0 : i64, scratch_operands = 3 : i64, tpu.core_type = #tpu.core_type<tc>, window_params = [{pipeline_mode = #tpu.pipeline_mode<synchronous>, transform_indices = @transform_0, window_bounds = array<i64: 8, 16>}, {transform_indices = @transform_1, window_bounds = array<i64: 1, 1, 16>}, {transform_indices = @transform_2, window_bounds = array<i64: 1, 1, 16, 32>}, {transform_indices = @transform_3, window_bounds = array<i64: 1, 1, 16, 32>}, {transform_indices = @transform_4, window_bounds = array<i64: 1, 1, 16, 32>}, {transform_indices = @transform_5, window_bounds = array<i64: 1, 1, 16, 32>}]} {
    %c0_i32 = arith.constant 0 : i32
    %0 = arith.cmpi eq, %arg1, %c0_i32 : i32
    %c0_i32_0 = arith.constant 0 : i32
    %1 = arith.cmpi eq, %arg2, %c0_i32_0 : i32
    %2 = arith.andi %0, %1 : i1
    %3 = arith.extui %2 : i1 to i32
    %c0_i32_1 = arith.constant 0 : i32
    %4 = arith.cmpi ne, %3, %c0_i32_1 : i32
    scf.if %4 {
      %c0_18 = arith.constant 0 : index
      %c0_19 = arith.constant 0 : index
      %27 = vector.load %arg3[%c0_18, %c0_19] : memref<8x16xf32, #tpu.memory_space<vmem>>, vector<8x16xf32>
      %c0_20 = arith.constant 0 : index
      %c0_21 = arith.constant 0 : index
      %c0_22 = arith.constant 0 : index
      %28 = vector.load %arg4[%c0_20, %c0_21, %c0_22] : memref<1x1x16xf32, #tpu.memory_space<vmem>>, vector<1x1x16xf32>
      %29 = vector.shape_cast %28 : vector<1x1x16xf32> to vector<1x16xf32>
      %30 = vector.broadcast %29 : vector<1x16xf32> to vector<8x16xf32>
      %31 = arith.mulf %27, %30 : vector<8x16xf32>
      %c0_23 = arith.constant 0 : index
      %c0_24 = arith.constant 0 : index
      %32 = vector.load %arg9[%c0_23, %c0_24] : memref<8x16xf32, #tpu.memory_space<vmem>>, vector<8x16xf32>
      tpu.vector_store %arg9[%c0_23, %c0_24], %31 {strides = array<i32>} : memref<8x16xf32, #tpu.memory_space<vmem>>, vector<8x16xf32>,
    } else {
    }
    %c0_i32_2 = arith.constant 0 : i32
    %5 = arith.cmpi eq, %arg2, %c0_i32_2 : i32
    %6 = arith.extui %5 : i1 to i32
    %c0_i32_3 = arith.constant 0 : i32
    %7 = arith.cmpi ne, %6, %c0_i32_3 : i32
    scf.if %7 {
      %c0_18 = arith.constant 0 : index
      %c0_19 = arith.constant 0 : index
      %27 = vector.load %arg9[%c0_18, %c0_19] : memref<8x16xf32, #tpu.memory_space<vmem>>, vector<8x16xf32>
      %c0_20 = arith.constant 0 : index
      %c0_21 = arith.constant 0 : index
      %c0_22 = arith.constant 0 : index
      %c0_23 = arith.constant 0 : index
      %28 = vector.load %arg6[%c0_20, %c0_21, %c0_22, %c0_23] : memref<1x1x16x32xf32, #tpu.memory_space<vmem>>, vector<1x1x16x32xf32>
      %29 = vector.shape_cast %28 : vector<1x1x16x32xf32> to vector<16x32xf32>
      %cst_24 = arith.constant dense<0.000000e+00> : vector<8x32xf32>
      %30 = tpu.matmul %27, %29, %cst_24 {dimension_numbers = #tpu.dot_dimension_numbers<[1], [0], [0], [1], [0, 0, 1, 1], [], []>} : vector<8x16xf32>, vector<16x32xf32>, vector<8x32xf32> -> vector<8x32xf32>
      %c0_25 = arith.constant 0 : index
      %c0_26 = arith.constant 0 : index
      %c0_27 = arith.constant 0 : index
      %c0_28 = arith.constant 0 : index
      %31 = vector.load %arg7[%c0_25, %c0_26, %c0_27, %c0_28] : memref<1x1x16x32xf32, #tpu.memory_space<vmem>>, vector<1x1x16x32xf32>
      %32 = vector.shape_cast %31 : vector<1x1x16x32xf32> to vector<16x32xf32>
      %cst_29 = arith.constant dense<0.000000e+00> : vector<8x32xf32>
      %33 = tpu.matmul %27, %32, %cst_29 {dimension_numbers = #tpu.dot_dimension_numbers<[1], [0], [0], [1], [0, 0, 1, 1], [], []>} : vector<8x16xf32>, vector<16x32xf32>, vector<8x32xf32> -> vector<8x32xf32>
      %cst_30 = arith.constant 0.176776692 : f32
      %34 = vector.broadcast %cst_30 : f32 to vector<8x32xf32>
      %35 = arith.mulf %30, %34 : vector<8x32xf32>
      %c0_31 = arith.constant 0 : index
      %c0_32 = arith.constant 0 : index
      %36 = vector.load %arg10[%c0_31, %c0_32] : memref<8x32xf32, #tpu.memory_space<vmem>>, vector<8x32xf32>
      tpu.vector_store %arg10[%c0_31, %c0_32], %35 {strides = array<i32>} : memref<8x32xf32, #tpu.memory_space<vmem>>, vector<8x32xf32>,
      %c0_33 = arith.constant 0 : index
      %c0_34 = arith.constant 0 : index
      %37 = vector.load %arg11[%c0_33, %c0_34] : memref<8x32xf32, #tpu.memory_space<vmem>>, vector<8x32xf32>
      tpu.vector_store %arg11[%c0_33, %c0_34], %33 {strides = array<i32>} : memref<8x32xf32, #tpu.memory_space<vmem>>, vector<8x32xf32>,
    } else {
    }
    %c0 = arith.constant 0 : index
    %c0_4 = arith.constant 0 : index
    %c0_5 = arith.constant 0 : index
    %c0_6 = arith.constant 0 : index
    %8 = vector.load %arg5[%c0, %c0_4, %c0_5, %c0_6] : memref<1x1x16x32xf32, #tpu.memory_space<vmem>>, vector<1x1x16x32xf32>
    %9 = vector.shape_cast %8 : vector<1x1x16x32xf32> to vector<16x32xf32>
    %c0_7 = arith.constant 0 : index
    %c0_8 = arith.constant 0 : index
    %10 = vector.load %arg10[%c0_7, %c0_8] : memref<8x32xf32, #tpu.memory_space<vmem>>, vector<8x32xf32>
    %cst = arith.constant dense<0.000000e+00> : vector<16x8xf32>
    %11 = tpu.matmul %9, %10, %cst {dimension_numbers = #tpu.dot_dimension_numbers<[1], [1], [0], [0], [0, 0, 1, 0], [], []>} : vector<16x32xf32>, vector<8x32xf32>, vector<16x8xf32> -> vector<16x8xf32>
    %cst_9 = arith.constant dense<0xFF800000> : vector<16xf32>
    %12 = vector.multi_reduction <maximumf>, %11, %cst_9 [1] : vector<16x8xf32> to vector<16xf32>
    %13 = vector.shape_cast %12 : vector<16xf32> to vector<16x1xf32>
    %14 = vector.broadcast %13 : vector<16x1xf32> to vector<16x8xf32>
    %15 = arith.subf %11, %14 : vector<16x8xf32>
    %16 = math.exp %15 : vector<16x8xf32>
    %cst_10 = arith.constant dense<0.000000e+00> : vector<16xf32>
    %17 = vector.multi_reduction <add>, %16, %cst_10 [1] : vector<16x8xf32> to vector<16xf32>
    %18 = vector.shape_cast %17 : vector<16xf32> to vector<16x1xf32>
    %19 = tpu.reciprocal %18 {approx = true} : vector<16x1xf32> -> vector<16x1xf32>
    %20 = vector.broadcast %19 : vector<16x1xf32> to vector<16x8xf32>
    %21 = arith.mulf %16, %20 : vector<16x8xf32>
    %c0_11 = arith.constant 0 : index
    %c0_12 = arith.constant 0 : index
    %22 = vector.load %arg11[%c0_11, %c0_12] : memref<8x32xf32, #tpu.memory_space<vmem>>, vector<8x32xf32>
    %cst_13 = arith.constant dense<0.000000e+00> : vector<16x32xf32>
    %23 = tpu.matmul %21, %22, %cst_13 {dimension_numbers = #tpu.dot_dimension_numbers<[1], [0], [0], [1], [0, 0, 1, 1], [], []>} : vector<16x8xf32>, vector<8x32xf32>, vector<16x32xf32> -> vector<16x32xf32>
    %c0_14 = arith.constant 0 : index
    %c0_15 = arith.constant 0 : index
    %c0_16 = arith.constant 0 : index
    %c0_17 = arith.constant 0 : index
    %24 = vector.load %arg8[%c0_14, %c0_15, %c0_16, %c0_17] : memref<1x1x16x32xf32, #tpu.memory_space<vmem>>, vector<1x1x16x32xf32>
    %25 = vector.shape_cast %24 : vector<1x1x16x32xf32> to vector<16x32xf32>
    %26 = vector.shape_cast %23 : vector<16x32xf32> to vector<1x1x16x32xf32>
    tpu.vector_store %arg8[%c0_14, %c0_15, %c0_16, %c0_17], %26 {strides = array<i32>} : memref<1x1x16x32xf32, #tpu.memory_space<vmem>>, vector<1x1x16x32xf32>,
    return
  }
  func.func @transform_0(%arg0: i32, %arg1: i32, %arg2: i32) -> (i32, i32) {
    %c0_i32 = arith.constant 0 : i32
    %c0_i32_0 = arith.constant 0 : i32
    %c0_i32_1 = arith.constant 0 : i32
    return %c0_i32, %c0_i32_0 : i32, i32
  }
  func.func @transform_1(%arg0: i32, %arg1: i32, %arg2: i32) -> (i32, i32, i32) {
    %c0_i32 = arith.constant 0 : i32
    %c0_i32_0 = arith.constant 0 : i32
    %c0_i32_1 = arith.constant 0 : i32
    return %arg0, %c0_i32, %c0_i32_0 : i32, i32, i32
  }
  func.func @transform_2(%arg0: i32, %arg1: i32, %arg2: i32) -> (i32, i32, i32, i32) {
    %c0_i32 = arith.constant 0 : i32
    %c0_i32_0 = arith.constant 0 : i32
    return %arg0, %arg1, %arg2, %c0_i32 : i32, i32, i32, i32
  }
  func.func @transform_3(%arg0: i32, %arg1: i32, %arg2: i32) -> (i32, i32, i32, i32) {
    %c0_i32 = arith.constant 0 : i32
    %c0_i32_0 = arith.constant 0 : i32
    %c0_i32_1 = arith.constant 0 : i32
    return %arg0, %arg1, %c0_i32, %c0_i32_0 : i32, i32, i32, i32
  }
  func.func @transform_4(%arg0: i32, %arg1: i32, %arg2: i32) -> (i32, i32, i32, i32) {
    %c0_i32 = arith.constant 0 : i32
    %c0_i32_0 = arith.constant 0 : i32
    %c0_i32_1 = arith.constant 0 : i32
    return %arg0, %arg1, %c0_i32, %c0_i32_0 : i32, i32, i32, i32
  }
  func.func @transform_5(%arg0: i32, %arg1: i32, %arg2: i32) -> (i32, i32, i32, i32) {
    %c0_i32 = arith.constant 0 : i32
    %c0_i32_0 = arith.constant 0 : i32
    return %arg0, %arg1, %arg2, %c0_i32 : i32, i32, i32, i32
  }
}

</mosaic_0001>

<llo_original>
// kernel: tpu_custom_call.1
$region0: #{tpu_custom_call.1}
  #allocation0 [shape = 'u32[]', space=smem, size = 0x4, offset = 0x4, fixed_abs, tag = 'smem constant byte address 0x4 - core index']
  #allocation1 [shape = 'u32[144,128]{1,0:T(1,128)}', space=vmem, size = 0x12000, scoped, tag = 'internal scratch']
  #allocation2 [shape = 'f32[8,16]{1,0:T(8,128)}', space=vmem, size = 0x1000, scoped, tag = 'scratch operand']
  #allocation3 [shape = 'f32[8,32]{1,0:T(8,128)}', space=vmem, size = 0x1000, scoped, tag = 'scratch operand']
  #allocation4 [shape = 'f32[8,32]{1,0:T(8,128)}', space=vmem, size = 0x1000, scoped, tag = 'scratch operand']
  %s0 = inlined_call_operand.hbm [shape: f32[8,16], index: 0, kind: input, shape index: {}]
  %s1 = inlined_call_operand.hbm [shape: f32[2,1,16], index: 1, kind: input, shape index: {}]
  %s2 = inlined_call_operand.hbm [shape: f32[2,2,16,32], index: 2, kind: input, shape index: {}]
  %s3 = inlined_call_operand.hbm [shape: f32[2,2,16,32], index: 3, kind: input, shape index: {}]
  %s4 = inlined_call_operand.hbm [shape: f32[2,2,16,32], index: 4, kind: input, shape index: {}]
  %s5 = inlined_call_operand.hbm [shape: f32[2,2,16,32], index: 5, kind: output, shape index: {}]
  %s6 = sld [smem:[#allocation0]]
  $region81: #{tpu_custom_call.1} parent=0
    _
  %s8 = ssub.s32 1, %s6
  %s9 = scalar_select 0, %s8, %s6
  $region1: #{tpu_custom_call.1} parent=0
    #allocation5 [shape = 'u8[4096]{0}', space=vmem, size = 0x1000, scoped, tag = 'input window, operand 0, single buffered']
    #allocation6 [shape = 's32[2]{0}', space=sflag, size = 0x8, scoped, tag = 'scoped memory for tpu_custom_call.1']
    #allocation7 [shape = 's32[2]{0}', space=sflag, size = 0x8, scoped, tag = 'scoped memory for tpu_custom_call.1']
    #allocation8 [shape = 'u8[1024]{0}', space=vmem, size = 0x400, scoped, tag = 'input window, operand 1']
    #allocation9 [shape = 's32[2]{0}', space=sflag, size = 0x8, scoped, tag = 'scoped memory for tpu_custom_call.1']
    #allocation10 [shape = 'u8[16384]{0}', space=vmem, size = 0x4000, scoped, tag = 'input window, operand 2']
    #allocation11 [shape = 'u8[16384]{0}', space=vmem, size = 0x4000, scoped, tag = 'input window, operand 3']
    #allocation12 [shape = 's32[2]{0}', space=sflag, size = 0x8, scoped, tag = 'scoped memory for tpu_custom_call.1']
    #allocation13 [shape = 'u8[16384]{0}', space=vmem, size = 0x4000, scoped, tag = 'input window, operand 4']
    #allocation14 [shape = 'u8[16384]{0}', space=vmem, size = 0x4000, scoped, tag = 'output window, operand 0']
    %10 = vsyncpa [#allocation6], 0
    %11 = vsyncpa [#allocation9], 0
    %s12 = scalar_lea.sflag [#allocation9], 1
    %13 = vsyncpa %s12, 0
    %14 = vsyncpa [#allocation12], 0
    %s15 = scalar_lea.sflag [#allocation12], 1
    %16 = vsyncpa %s15, 0
    %17 = vsyncpa [#allocation7], 0
    %s18 = scalar_lea.sflag [#allocation7], 1
    %19 = vsyncpa %s18, 0
    loop: start=0, step=1, limit=6
    $region2: #{tpu_custom_call.1} parent=1 // loop_pre_header
      _
    $region3: #{tpu_custom_call.1} parent=1 // loop_header
      %s21 = sphi 0, %s25
      %p22 = scmp.ge.s32.totalorder %s21, 6
      %s28 = sphi 0, %s47
      %s29 = sphi 0, %s43
      %s30 = sphi 0, %s39
      %s31 = sphi 0, %s28
      %s32 = sphi 0, %s29
      %s33 = sphi 0, %s30
      %s34 = sphi 0, %s31
      %s35 = sphi 0, %s32
      %s36 = sphi 0, %s33
      %s48 = sphi 0, %s48
      %s50 = sphi 0, %s48
      %s51 = sphi 0, %s50
      %s65 = sphi 0, %s51
      %s71 = sphi 0, %s73
      %s74 = sphi 0, %s71
      %s75 = sphi 0, %s74
      %s91 = sphi 0, %s75
      %s101 = sphi 0, %s103
      %s104 = sphi 0, %s101
      %s105 = sphi 0, %s104
      %s121 = sphi 0, %s105
      %s129 = sphi 0, %s131
      %s132 = sphi 0, %s129
      %s133 = sphi 0, %s132
      %s149 = sphi 0, %s133
      %s157 = sphi 0, %s159
      %s160 = sphi 0, %s157
      %s161 = sphi 0, %s160
      %s177 = sphi 0, %s161
      %s187 = sphi 0, %s189
      %s190 = sphi 0, %s187
      %s191 = sphi 0, %s190
      %s207 = sphi 0, %s191
    $region4: #{tpu_custom_call.1} parent=1 // loop_header_branch
      %24 = sbr.rel (%p22) target = $region8
    $region5: #{tpu_custom_call.1} parent=1 // loop_body
      %s26 = ssub.s32 %s21, 1
      %s27 = ssub.s32 %s21, 2
      %s37 = sadd.s32 1, %s30
      %p38 = scmp.ge.s32.totalorder %s37, 1
      %s39 = scalar_select %p38, 0, %s37
      %s40 = sadd.s32 1, %s29
      %s41 = scalar_select %p38, %s40, %s29
      %p42 = scmp.ge.s32.totalorder %s41, 2
      %s43 = scalar_select %p42, 0, %s41
      %s44 = sadd.s32 1, %s28
      %s45 = scalar_select %p42, %s44, %s28
      %p46 = scmp.ge.s32.totalorder %s45, 2
      %s47 = scalar_select %p46, 0, %s45
      %s49 = sadd.s32 %s48, 1
      %p52 = scmp.eq.s32.totalorder %s21, 3
      %p53 = scmp.ne.s32.totalorder %s48, %s50
      %p54 = scmp.eq.s32.totalorder %s21, 0
      %p55 = por %p53, %p54
      %p56 = scmp.ne.s32.totalorder %s48, %s50
      %p57 = scmp.eq.s32.totalorder %s26, 3
      %p58 = por %p56, %p57
      %p59 = scmp.ne.s32.totalorder %s50, %s51
      %p60 = scmp.eq.s32.totalorder %s26, 0
      %p61 = por %p59, %p60
      %p62 = scmp.ne.s32.totalorder %s50, %s51
      %p63 = scmp.eq.s32.totalorder %s27, 3
      %p64 = por %p62, %p63
      %p66 = scmp.ne.s32.totalorder %s51, %s65
      %p67 = scmp.eq.s32.totalorder %s27, 0
      %p68 = por %p66, %p67
      %s69 = ssub.s32 %s28, %s47
      %p70 = scmp.eq.s32.totalorder %s69, 0
      %s72 = sadd.s32 %s71, 1
      %s73 = scalar_select %p70, %s71, %s72
      %p76 = pneg %p70
      %p77 = scmp.eq.s32.totalorder %s21, 3
      %p78 = por %p76, %p77
      %p79 = scmp.ne.s32.totalorder %s71, %s74
      %p80 = scmp.eq.s32.totalorder %s21, 0
      %p81 = por %p79, %p80
      %p82 = scmp.ne.s32.totalorder %s71, %s74
      %p83 = scmp.eq.s32.totalorder %s26, 3
      %p84 = por %p82, %p83
      %p85 = scmp.ne.s32.totalorder %s74, %s75
      %p86 = scmp.eq.s32.totalorder %s26, 0
      %p87 = por %p85, %p86
      %p88 = scmp.ne.s32.totalorder %s74, %s75
      %p89 = scmp.eq.s32.totalorder %s27, 3
      %p90 = por %p88, %p89
      %p92 = scmp.ne.s32.totalorder %s75, %s91
      %p93 = scmp.eq.s32.totalorder %s27, 0
      %p94 = por %p92, %p93
      %s95 = ssub.s32 %s28, %s47
      %s96 = ssub.s32 %s29, %s43
      %s97 = sor.u32 %s95, %s96
      %s98 = ssub.s32 %s30, %s39
      %s99 = sor.u32 %s97, %s98
      %p100 = scmp.eq.s32.totalorder %s99, 0
      %s102 = sadd.s32 %s101, 1
      %s103 = scalar_select %p100, %s101, %s102
      %p106 = pneg %p100
      %p107 = scmp.eq.s32.totalorder %s21, 3
      %p108 = por %p106, %p107
      %p109 = scmp.ne.s32.totalorder %s101, %s104
      %p110 = scmp.eq.s32.totalorder %s21, 0
      %p111 = por %p109, %p110
      %p112 = scmp.ne.s32.totalorder %s101, %s104
      %p113 = scmp.eq.s32.totalorder %s26, 3
      %p114 = por %p112, %p113
      %p115 = scmp.ne.s32.totalorder %s104, %s105
      %p116 = scmp.eq.s32.totalorder %s26, 0
      %p117 = por %p115, %p116
      %p118 = scmp.ne.s32.totalorder %s104, %s105
      %p119 = scmp.eq.s32.totalorder %s27, 3
      %p120 = por %p118, %p119
      %p122 = scmp.ne.s32.totalorder %s105, %s121
      %p123 = scmp.eq.s32.totalorder %s27, 0
      %p124 = por %p122, %p123
      %s125 = ssub.s32 %s28, %s47
      %s126 = ssub.s32 %s29, %s43
      %s127 = sor.u32 %s125, %s126
      %p128 = scmp.eq.s32.totalorder %s127, 0
      %s130 = sadd.s32 %s129, 1
      %s131 = scalar_select %p128, %s129, %s130
      %p134 = pneg %p128
      %p135 = scmp.eq.s32.totalorder %s21, 3
      %p136 = por %p134, %p135
      %p137 = scmp.ne.s32.totalorder %s129, %s132
      %p138 = scmp.eq.s32.totalorder %s21, 0
      %p139 = por %p137, %p138
      %p140 = scmp.ne.s32.totalorder %s129, %s132
      %p141 = scmp.eq.s32.totalorder %s26, 3
      %p142 = por %p140, %p141
      %p143 = scmp.ne.s32.totalorder %s132, %s133
      %p144 = scmp.eq.s32.totalorder %s26, 0
      %p145 = por %p143, %p144
      %p146 = scmp.ne.s32.totalorder %s132, %s133
      %p147 = scmp.eq.s32.totalorder %s27, 3
      %p148 = por %p146, %p147
      %p150 = scmp.ne.s32.totalorder %s133, %s149
      %p151 = scmp.eq.s32.totalorder %s27, 0
      %p152 = por %p150, %p151
      %s153 = ssub.s32 %s28, %s47
      %s154 = ssub.s32 %s29, %s43
      %s155 = sor.u32 %s153, %s154
      %p156 = scmp.eq.s32.totalorder %s155, 0
      %s158 = sadd.s32 %s157, 1
      %s159 = scalar_select %p156, %s157, %s158
      %p162 = pneg %p156
      %p163 = scmp.eq.s32.totalorder %s21, 3
      %p164 = por %p162, %p163
      %p165 = scmp.ne.s32.totalorder %s157, %s160
      %p166 = scmp.eq.s32.totalorder %s21, 0
      %p167 = por %p165, %p166
      %p168 = scmp.ne.s32.totalorder %s157, %s160
      %p169 = scmp.eq.s32.totalorder %s26, 3
      %p170 = por %p168, %p169
      %p171 = scmp.ne.s32.totalorder %s160, %s161
      %p172 = scmp.eq.s32.totalorder %s26, 0
      %p173 = por %p171, %p172
      %p174 = scmp.ne.s32.totalorder %s160, %s161
      %p175 = scmp.eq.s32.totalorder %s27, 3
      %p176 = por %p174, %p175
      %p178 = scmp.ne.s32.totalorder %s161, %s177
      %p179 = scmp.eq.s32.totalorder %s27, 0
      %p180 = por %p178, %p179
      %s181 = ssub.s32 %s28, %s47
      %s182 = ssub.s32 %s29, %s43
      %s183 = sor.u32 %s181, %s182
      %s184 = ssub.s32 %s30, %s39
      %s185 = sor.u32 %s183, %s184
      %p186 = scmp.eq.s32.totalorder %s185, 0
      %s188 = sadd.s32 %s187, 1
      %s189 = scalar_select %p186, %s187, %s188
      %p192 = pneg %p186
      %p193 = scmp.eq.s32.totalorder %s21, 3
      %p194 = por %p192, %p193
      %p195 = scmp.ne.s32.totalorder %s187, %s190
      %p196 = scmp.eq.s32.totalorder %s21, 0
      %p197 = por %p195, %p196
      %p198 = scmp.ne.s32.totalorder %s187, %s190
      %p199 = scmp.eq.s32.totalorder %s26, 3
      %p200 = por %p198, %p199
      %p201 = scmp.ne.s32.totalorder %s190, %s191
      %p202 = scmp.eq.s32.totalorder %s26, 0
      %p203 = por %p201, %p202
      %p204 = scmp.ne.s32.totalorder %s190, %s191
      %p205 = scmp.eq.s32.totalorder %s27, 3
      %p206 = por %p204, %p205
      %p208 = scmp.ne.s32.totalorder %s191, %s207
      %p209 = scmp.eq.s32.totalorder %s27, 0
      %p210 = por %p208, %p209
      %p211 = scmp.le.s32.totalorder 1, %s21
      %p212 = scmp.lt.s32.totalorder %s21, 5
      %p213 = pnand %p211, %p212
      %p214 = pneg %p213
      // Predicated region
      $region9: #{tpu_custom_call.1} parent=5 // pred_check
        _
      $region10: #{tpu_custom_call.1} parent=5 // pred_check_branch
        %216 = sbr.rel (%p213) target = $region12
      $region11: #{tpu_custom_call.1} parent=5 // pred_region
        %s217 = ssub.s32 %s21, 1
        // Predicated region
        $region13: #{tpu_custom_call.1} parent=11 // pred_check
          %p218 = pneg %p61
        $region14: #{tpu_custom_call.1} parent=11 // pred_check_branch
          %220 = sbr.rel (%p218) target = $region16
        $region15: #{tpu_custom_call.1} parent=11 // pred_region
          %s222 = ssub.s32 128, 128
          %223 = vsyncadd [#allocation6], %s222
          %s225 = sshll.u32 [#allocation5], 4
          %s226 = int_to_ptr.vmem [resolvable:$true] %s225
          %228 = dma.hbm_to_vmem [thread:$0]  %s0, 128, %s226, [#allocation6]
        $region16: #{tpu_custom_call.1} parent=11 // pred_fallthru
          _
      $region12: #{tpu_custom_call.1} parent=5 // pred_fallthru
        _
      %p229 = scmp.lt.s32.totalorder %s21, 4
      // Predicated region
      $region17: #{tpu_custom_call.1} parent=5 // pred_check
        %p230 = pneg %p229
      $region18: #{tpu_custom_call.1} parent=5 // pred_check_branch
        %232 = sbr.rel (%p230) target = $region20
      $region19: #{tpu_custom_call.1} parent=5 // pred_region
        // Predicated region
        $region21: #{tpu_custom_call.1} parent=19 // pred_check
          %p233 = pneg %p81
        $region22: #{tpu_custom_call.1} parent=19 // pred_check_branch
          %235 = sbr.rel (%p233) target = $region24
        $region23: #{tpu_custom_call.1} parent=19 // pred_region
          %s236 = sand.u32 %s21, 1
          %s237 = scalar_lea.sflag [#allocation9], %s236
          %s238 = sand.u32 %s71, 1
          %s239 = scalar_lea.vmem [#allocation8], %s238
          %s241 = ssub.s32 16, 16
          %242 = vsyncadd %s237, %s241
          %s243 = smul.addr %s28, 16
          %s244 = scalar_lea.hbm %s1, %s243
          %s246 = sshll.u32 %s239, 4
          %s247 = int_to_ptr.vmem [resolvable:$true] %s246
          %249 = dma.hbm_to_vmem [thread:$0]  %s244, 16, %s247, %s237
        $region24: #{tpu_custom_call.1} parent=19 // pred_fallthru
          _
        // Predicated region
        $region25: #{tpu_custom_call.1} parent=19 // pred_check
          %p250 = pneg %p111
        $region26: #{tpu_custom_call.1} parent=19 // pred_check_branch
          %252 = sbr.rel (%p250) target = $region28
        $region27: #{tpu_custom_call.1} parent=19 // pred_region
          %s253 = sand.u32 %s21, 1
          %s254 = scalar_lea.sflag [#allocation9], %s253
          %s255 = sand.u32 %s101, 1
          %s256 = smul.addr %s255, 16
          %s257 = scalar_lea.vmem [#allocation10], %s256
          %s258 = smul.u32 2, %s30
          %s260 = ssub.s32 256, 256
          %261 = vsyncadd %s254, %s260
          %s262 = smul.addr %s29, 2
          %s263 = sadd.s32 %s258, %s262
          %s264 = smul.addr %s28, 4
          %s265 = sadd.s32 %s263, %s264
          %s266 = smul.addr %s265, 128
          %s267 = scalar_lea.hbm %s2, %s266
          %s268 = sshll.u32 %s257, 4
          %s269 = int_to_ptr.vmem [resolvable:$true] %s268
          %274 = dma.hbm_to_vmem [thread:$0]  %s267, 256, %s269, %s254, 128, 128, 8
        $region28: #{tpu_custom_call.1} parent=19 // pred_fallthru
          _
        // Predicated region
        $region29: #{tpu_custom_call.1} parent=19 // pred_check
          %p275 = pneg %p139
        $region30: #{tpu_custom_call.1} parent=19 // pred_check_branch
          %277 = sbr.rel (%p275) target = $region32
        $region31: #{tpu_custom_call.1} parent=19 // pred_region
          %s278 = sand.u32 %s21, 1
          %s279 = scalar_lea.sflag [#allocation12], %s278
          %s280 = sand.u32 %s129, 1
          %s281 = smul.addr %s280, 16
          %s282 = scalar_lea.vmem [#allocation11], %s281
          %s284 = ssub.s32 256, 256
          %285 = vsyncadd %s279, %s284
          %s286 = smul.addr %s29, 2
          %s287 = smul.addr %s28, 4
          %s288 = sadd.s32 %s286, %s287
          %s289 = smul.addr %s288, 128
          %s290 = scalar_lea.hbm %s3, %s289
          %s291 = sshll.u32 %s282, 4
          %s292 = int_to_ptr.vmem [resolvable:$true] %s291
          %297 = dma.hbm_to_vmem [thread:$0]  %s290, 256, %s292, %s279, 128, 128, 8
        $region32: #{tpu_custom_call.1} parent=19 // pred_fallthru
          _
        // Predicated region
        $region33: #{tpu_custom_call.1} parent=19 // pred_check
          %p298 = pneg %p167
        $region34: #{tpu_custom_call.1} parent=19 // pred_check_branch
          %300 = sbr.rel (%p298) target = $region36
        $region35: #{tpu_custom_call.1} parent=19 // pred_region
          %s301 = sand.u32 %s21, 1
          %s302 = scalar_lea.sflag [#allocation12], %s301
          %s303 = sand.u32 %s157, 1
          %s304 = smul.addr %s303, 16
          %s305 = scalar_lea.vmem [#allocation13], %s304
          %s307 = ssub.s32 256, 256
          %308 = vsyncadd %s302, %s307
          %s309 = smul.addr %s29, 2
          %s310 = smul.addr %s28, 4
          %s311 = sadd.s32 %s309, %s310
          %s312 = smul.addr %s311, 128
          %s313 = scalar_lea.hbm %s4, %s312
          %s314 = sshll.u32 %s305, 4
          %s315 = int_to_ptr.vmem [resolvable:$true] %s314
          %320 = dma.hbm_to_vmem [thread:$0]  %s313, 256, %s315, %s302, 128, 128, 8
        $region36: #{tpu_custom_call.1} parent=19 // pred_fallthru
          _
      $region20: #{tpu_custom_call.1} parent=5 // pred_fallthru
        _
      %p321 = scmp.le.s32.totalorder 1, %s21
      %p322 = scmp.lt.s32.totalorder %s21, 5
      %p323 = pnand %p321, %p322
      %p324 = pneg %p323
      // Predicated region
      $region37: #{tpu_custom_call.1} parent=5 // pred_check
        _
      $region38: #{tpu_custom_call.1} parent=5 // pred_check_branch
        %326 = sbr.rel (%p323) target = $region40
      $region39: #{tpu_custom_call.1} parent=5 // pred_region
        %s327 = ssub.s32 %s21, 1
        // Predicated region
        $region41: #{tpu_custom_call.1} parent=39 // pred_check
          %p328 = pneg %p61
        $region42: #{tpu_custom_call.1} parent=39 // pred_check_branch
          %330 = sbr.rel (%p328) target = $region44
        $region43: #{tpu_custom_call.1} parent=39 // pred_region
          %331 = dma.done [#allocation6], 128
        $region44: #{tpu_custom_call.1} parent=39 // pred_fallthru
          _
        %s332 = sand.u32 %s26, 1
        %s333 = scalar_lea.sflag [#allocation9], %s332
        %s334 = sand.u32 %s74, 1
        %s335 = scalar_lea.vmem [#allocation8], %s334
        // Predicated region
        $region45: #{tpu_custom_call.1} parent=39 // pred_check
          %p336 = pneg %p87
        $region46: #{tpu_custom_call.1} parent=39 // pred_check_branch
          %338 = sbr.rel (%p336) target = $region48
        $region47: #{tpu_custom_call.1} parent=39 // pred_region
          %339 = dma.done %s333, 16
        $region48: #{tpu_custom_call.1} parent=39 // pred_fallthru
          _
        %s340 = sand.u32 %s26, 1
        %s341 = scalar_lea.sflag [#allocation9], %s340
        %s342 = sand.u32 %s104, 1
        %s343 = smul.addr %s342, 16
        %s344 = scalar_lea.vmem [#allocation10], %s343
        // Predicated region
        $region49: #{tpu_custom_call.1} parent=39 // pred_check
          %p345 = pneg %p117
        $region50: #{tpu_custom_call.1} parent=39 // pred_check_branch
          %347 = sbr.rel (%p345) target = $region52
        $region51: #{tpu_custom_call.1} parent=39 // pred_region
          %348 = dma.done %s341, 256
        $region52: #{tpu_custom_call.1} parent=39 // pred_fallthru
          _
        %s349 = sand.u32 %s26, 1
        %s350 = scalar_lea.sflag [#allocation12], %s349
        %s351 = sand.u32 %s132, 1
        %s352 = smul.addr %s351, 16
        %s353 = scalar_lea.vmem [#allocation11], %s352
        // Predicated region
        $region53: #{tpu_custom_call.1} parent=39 // pred_check
          %p354 = pneg %p145
        $region54: #{tpu_custom_call.1} parent=39 // pred_check_branch
          %356 = sbr.rel (%p354) target = $region56
        $region55: #{tpu_custom_call.1} parent=39 // pred_region
          %357 = dma.done %s350, 256
        $region56: #{tpu_custom_call.1} parent=39 // pred_fallthru
          _
        %s358 = sand.u32 %s26, 1
        %s359 = scalar_lea.sflag [#allocation12], %s358
        %s360 = sand.u32 %s160, 1
        %s361 = smul.addr %s360, 16
        %s362 = scalar_lea.vmem [#allocation13], %s361
        // Predicated region
        $region57: #{tpu_custom_call.1} parent=39 // pred_check
          %p363 = pneg %p173
        $region58: #{tpu_custom_call.1} parent=39 // pred_check_branch
          %365 = sbr.rel (%p363) target = $region60
        $region59: #{tpu_custom_call.1} parent=39 // pred_region
          %366 = dma.done %s359, 256
        $region60: #{tpu_custom_call.1} parent=39 // pred_fallthru
          _
        %p367 = pneg %p61
        %p368 = pneg %p58
        %s369 = sand.u32 %s26, 1
        %s370 = scalar_lea.sflag [#allocation9], %s369
        %s371 = sand.u32 %s74, 1
        %s372 = scalar_lea.vmem [#allocation8], %s371
        %p373 = pneg %p87
        %p374 = pneg %p84
        %s375 = sand.u32 %s26, 1
        %s376 = scalar_lea.sflag [#allocation9], %s375
        %s377 = sand.u32 %s104, 1
        %s378 = smul.addr %s377, 16
        %s379 = scalar_lea.vmem [#allocation10], %s378
        %p380 = pneg %p117
        %p381 = pneg %p114
        %s382 = sand.u32 %s26, 1
        %s383 = scalar_lea.sflag [#allocation12], %s382
        %s384 = sand.u32 %s132, 1
        %s385 = smul.addr %s384, 16
        %s386 = scalar_lea.vmem [#allocation11], %s385
        %p387 = pneg %p145
        %p388 = pneg %p142
        %s389 = sand.u32 %s26, 1
        %s390 = scalar_lea.sflag [#allocation12], %s389
        %s391 = sand.u32 %s160, 1
        %s392 = smul.addr %s391, 16
        %s393 = scalar_lea.vmem [#allocation13], %s392
        %p394 = pneg %p173
        %p395 = pneg %p170
        %p396 = pneg %p203
        %p397 = pneg %p200
        %s398 = sand.u32 %s190, 1
        %s399 = scalar_lea.sflag [#allocation7], %s398
        %s400 = sand.u32 %s190, 1
        %s401 = smul.addr %s400, 16
        %s402 = scalar_lea.vmem [#allocation14], %s401
        %s403 = smul.u32 2, %s33
        %s404 = smul.u32 2, %s33
        %p405 = scmp.eq.s32.totalorder %s32, 0
        %p406 = scmp.eq.s32.totalorder %s33, 0
        %p407 = pnand %p405, %p406
        %p408 = pneg %p407
        // Predicated region
        $region61: #{tpu_custom_call.1} parent=39 // pred_check
          _
        $region62: #{tpu_custom_call.1} parent=39 // pred_check_branch
          %410 = sbr.rel (%p407) target = $region64
        $region63: #{tpu_custom_call.1} parent=39 // pred_region
          %v411 = vld [vmem:[#allocation5] sm:$0xff]
          %v412 = vld [vmem:[%s335] sm:$0x1]
          %v414 = vlaneseq
          %v415 = vshrl.u32 %v414, 7
          %v416 = vsub.s32 0, %v415
          %v417 = vrot.slane %v412, %v416
          %v419 = vmul.f32 %v411, %v417
          %vm420 = vcmask 130048
          %421 = vst.msk [vmem:[#allocation2] sm:$0xff] %vm420, %v419
        $region64: #{tpu_custom_call.1} parent=39 // pred_fallthru
          _
        // Predicated region
        $region65: #{tpu_custom_call.1} parent=39 // pred_check
          %p422 = pneg %p406
        $region66: #{tpu_custom_call.1} parent=39 // pred_check_branch
          %424 = sbr.rel (%p422) target = $region68
        $region67: #{tpu_custom_call.1} parent=39 // pred_region
          %v425 = vld [vmem:[#allocation2] sm:$0xff]
          %v426 = vld [vmem:[%s353] sm:$0xff]
          %v427 = vld [vmem:[%s353 + $0x8] sm:$0xff]
          %vm428 = vcmask 130048
          %v430 = vsel %vm428, %v425, 0
          %432 = vmatprep.subr.mxu0 0.0
          %433 = vmatpush1.msra.mxu0 %v426
          %434 = vmatprep.subr.mxu0 0.0
          %435 = vmatpush1.msra.mxu0 %v427
          %436 = vmatprep.subr.mxu0 0.0
          %437 = vmatpush1.msra.mxu0 0.0
          %438 = vmatprep.subr.mxu0 0.0
          %439 = vmatpush1.msra.mxu0 0.0
          %440 = vmatprep.subr.mxu0 0.0
          %441 = vmatpush1.msra.mxu0 0.0
          %442 = vmatprep.subr.mxu0 0.0
          %443 = vmatpush1.msra.mxu0 0.0
          %444 = vmatprep.subr.mxu0 0.0
          %445 = vmatpush1.msra.mxu0 0.0
          %446 = vmatprep.subr.mxu0 0.0
          %447 = vmatpush1.msra.mxu0 0.0
          %448 = vmatprep.subr.mxu0 0.0
          %449 = vmatpush1.msra.mxu0 0.0
          %450 = vmatprep.subr.mxu0 0.0
          %451 = vmatpush1.msra.mxu0 0.0
          %452 = vmatprep.subr.mxu0 0.0
          %453 = vmatpush1.msra.mxu0 0.0
          %454 = vmatprep.subr.mxu0 0.0
          %455 = vmatpush1.msra.mxu0 0.0
          %456 = vmatprep.subr.mxu0 0.0
          %457 = vmatpush1.msra.mxu0 0.0
          %458 = vmatprep.subr.mxu0 0.0
          %459 = vmatpush1.msra.mxu0 0.0
          %460 = vmatprep.subr.mxu0 0.0
          %461 = vmatpush1.msra.mxu0 0.0
          %462 = vmatprep.subr.mxu0 0.0
          %463 = vmatpush1.msra.mxu0 0.0
          %464 = vmatprep.subr.mxu0 0.0
          %465 = vmatpush1.msra.mxu0 0.0
          %466 = vmatprep.subr.mxu0 0.0
          %467 = vmatpush1.msra.mxu0 0.0
          %468 = vmatprep.subr.mxu0 0.0
          %469 = vmatpush1.msra.mxu0 0.0
          %470 = vmatprep.subr.mxu0 0.0
          %471 = vmatpush1.msra.mxu0 0.0
          %472 = vmatprep.subr.mxu0 0.0
          %473 = vmatpush1.msra.mxu0 0.0
          %474 = vmatprep.subr.mxu0 0.0
          %475 = vmatpush1.msra.mxu0 0.0
          %476 = vmatprep.subr.mxu0 0.0
          %477 = vmatpush1.msra.mxu0 0.0
          %478 = vmatprep.subr.mxu0 0.0
          %479 = vmatpush1.msra.mxu0 0.0
          %480 = vmatprep.subr.mxu0 0.0
          %481 = vmatpush1.msra.mxu0 0.0
          %482 = vmatprep.subr.mxu0 0.0
          %483 = vmatpush1.msra.mxu0 0.0
          %484 = vmatprep.subr.mxu0 0.0
          %485 = vmatpush1.msra.mxu0 0.0
          %486 = vmatprep.subr.mxu0 0.0
          %487 = vmatpush1.msra.mxu0 0.0
          %488 = vmatprep.subr.mxu0 0.0
          %489 = vmatpush1.msra.mxu0 0.0
          %490 = vmatprep.subr.mxu0 0.0
          %491 = vmatpush1.msra.mxu0 0.0
          %492 = vmatprep.subr.mxu0 0.0
          %493 = vmatpush1.msra.mxu0 0.0
          %494 = vmatprep.subr.mxu0 0.0
          %495 = vmatpush1.msra.mxu0 0.0
          %496 = vmatprep.mubr.f32.mxu0 0.0
          %497 = vmatmul.mubr.f32.gmra.mrb[0].mxu0 %v430
          %v498 = vpop.f32.mrb[0].mxu0
          %v499 = vadd.f32 0.0, %v498
          %v500 = vpop.f32.mrb[0].mxu0
          %501 = vdwg.mxu0
          %v502 = vld [vmem:[%s362] sm:$0xff]
          %v503 = vld [vmem:[%s362 + $0x8] sm:$0xff]
          %504 = vmatprep.subr.mxu0 0.0
          %505 = vmatpush1.msra.mxu0 %v502
          %506 = vmatprep.subr.mxu0 0.0
          %507 = vmatpush1.msra.mxu0 %v503
          %508 = vmatprep.subr.mxu0 0.0
          %509 = vmatpush1.msra.mxu0 0.0
          %510 = vmatprep.subr.mxu0 0.0
          %511 = vmatpush1.msra.mxu0 0.0
          %512 = vmatprep.subr.mxu0 0.0
          %513 = vmatpush1.msra.mxu0 0.0
          %514 = vmatprep.subr.mxu0 0.0
          %515 = vmatpush1.msra.mxu0 0.0
          %516 = vmatprep.subr.mxu0 0.0
          %517 = vmatpush1.msra.mxu0 0.0
          %518 = vmatprep.subr.mxu0 0.0
          %519 = vmatpush1.msra.mxu0 0.0
          %520 = vmatprep.subr.mxu0 0.0
          %521 = vmatpush1.msra.mxu0 0.0
          %522 = vmatprep.subr.mxu0 0.0
          %523 = vmatpush1.msra.mxu0 0.0
          %524 = vmatprep.subr.mxu0 0.0
          %525 = vmatpush1.msra.mxu0 0.0
          %526 = vmatprep.subr.mxu0 0.0
          %527 = vmatpush1.msra.mxu0 0.0
          %528 = vmatprep.subr.mxu0 0.0
          %529 = vmatpush1.msra.mxu0 0.0
          %530 = vmatprep.subr.mxu0 0.0
          %531 = vmatpush1.msra.mxu0 0.0
          %532 = vmatprep.subr.mxu0 0.0
          %533 = vmatpush1.msra.mxu0 0.0
          %534 = vmatprep.subr.mxu0 0.0
          %535 = vmatpush1.msra.mxu0 0.0
          %536 = vmatprep.subr.mxu0 0.0
          %537 = vmatpush1.msra.mxu0 0.0
          %538 = vmatprep.subr.mxu0 0.0
          %539 = vmatpush1.msra.mxu0 0.0
          %540 = vmatprep.subr.mxu0 0.0
          %541 = vmatpush1.msra.mxu0 0.0
          %542 = vmatprep.subr.mxu0 0.0
          %543 = vmatpush1.msra.mxu0 0.0
          %544 = vmatprep.subr.mxu0 0.0
          %545 = vmatpush1.msra.mxu0 0.0
          %546 = vmatprep.subr.mxu0 0.0
          %547 = vmatpush1.msra.mxu0 0.0
          %548 = vmatprep.subr.mxu0 0.0
          %549 = vmatpush1.msra.mxu0 0.0
          %550 = vmatprep.subr.mxu0 0.0
          %551 = vmatpush1.msra.mxu0 0.0
          %552 = vmatprep.subr.mxu0 0.0
          %553 = vmatpush1.msra.mxu0 0.0
          %554 = vmatprep.subr.mxu0 0.0
          %555 = vmatpush1.msra.mxu0 0.0
          %556 = vmatprep.subr.mxu0 0.0
          %557 = vmatpush1.msra.mxu0 0.0
          %558 = vmatprep.subr.mxu0 0.0
          %559 = vmatpush1.msra.mxu0 0.0
          %560 = vmatprep.subr.mxu0 0.0
          %561 = vmatpush1.msra.mxu0 0.0
          %562 = vmatprep.subr.mxu0 0.0
          %563 = vmatpush1.msra.mxu0 0.0
          %564 = vmatprep.subr.mxu0 0.0
          %565 = vmatpush1.msra.mxu0 0.0
          %566 = vmatprep.subr.mxu0 0.0
          %567 = vmatpush1.msra.mxu0 0.0
          %568 = vmatprep.mubr.f32.mxu0 0.0
          %569 = vmatmul.mubr.f32.gmra.mrb[0].mxu0 %v430
          %v570 = vpop.f32.mrb[0].mxu0
          %v571 = vadd.f32 0.0, %v570
          %v572 = vpop.f32.mrb[0].mxu0
          %573 = vdwg.mxu0
          %v574 = vmul.f32 %v499, 0.17677669
          %vm575 = vcmask 261120
          %576 = vst.msk [vmem:[#allocation3] sm:$0xff] %vm575, %v574
          %577 = vst.msk [vmem:[#allocation4] sm:$0xff] %vm575, %v571
        $region68: #{tpu_custom_call.1} parent=39 // pred_fallthru
          _
        %v578 = vld [vmem:[%s344] sm:$0xff]
        %v579 = vld [vmem:[%s344 + $0x8] sm:$0xff]
        %v580 = vld [vmem:[#allocation3] sm:$0xff]
        %vm581 = vcmask 261120
        %v583 = vsel %vm581, %v578, 0
        %v586 = vsel %vm581, %v579, 0
        %v589 = vsel %vm581, %v580, 0
        %591 = vmatprep.subr.mxu0 0.0
        %592 = vmatpush1.xpose.msra.mxu0 %v589
        %593 = vmatprep.subr.mxu0 0.0
        %594 = vmatpush1.xpose.msra.mxu0 0.0
        %595 = vmatprep.subr.mxu0 0.0
        %596 = vmatpush1.xpose.msra.mxu0 0.0
        %597 = vmatprep.subr.mxu0 0.0
        %598 = vmatpush1.xpose.msra.mxu0 0.0
        %599 = vmatprep.subr.mxu0 0.0
        %600 = vmatpush1.xpose.msra.mxu0 0.0
        %601 = vmatprep.subr.mxu0 0.0
        %602 = vmatpush1.xpose.msra.mxu0 0.0
        %603 = vmatprep.subr.mxu0 0.0
        %604 = vmatpush1.xpose.msra.mxu0 0.0
        %605 = vmatprep.subr.mxu0 0.0
        %606 = vmatpush1.xpose.msra.mxu0 0.0
        %607 = vmatprep.subr.mxu0 0.0
        %608 = vmatpush1.xpose.msra.mxu0 0.0
        %609 = vmatprep.subr.mxu0 0.0
        %610 = vmatpush1.xpose.msra.mxu0 0.0
        %611 = vmatprep.subr.mxu0 0.0
        %612 = vmatpush1.xpose.msra.mxu0 0.0
        %613 = vmatprep.subr.mxu0 0.0
        %614 = vmatpush1.xpose.msra.mxu0 0.0
        %615 = vmatprep.subr.mxu0 0.0
        %616 = vmatpush1.xpose.msra.mxu0 0.0
        %617 = vmatprep.subr.mxu0 0.0
        %618 = vmatpush1.xpose.msra.mxu0 0.0
        %619 = vmatprep.subr.mxu0 0.0
        %620 = vmatpush1.xpose.msra.mxu0 0.0
        %621 = vmatprep.subr.mxu0 0.0
        %622 = vmatpush1.xpose.msra.mxu0 0.0
        %623 = vmatprep.subr.mxu0 0.0
        %624 = vmatpush1.xpose.msra.mxu0 0.0
        %625 = vmatprep.subr.mxu0 0.0
        %626 = vmatpush1.xpose.msra.mxu0 0.0
        %627 = vmatprep.subr.mxu0 0.0
        %628 = vmatpush1.xpose.msra.mxu0 0.0
        %629 = vmatprep.subr.mxu0 0.0
        %630 = vmatpush1.xpose.msra.mxu0 0.0
        %631 = vmatprep.subr.mxu0 0.0
        %632 = vmatpush1.xpose.msra.mxu0 0.0
        %633 = vmatprep.subr.mxu0 0.0
        %634 = vmatpush1.xpose.msra.mxu0 0.0
        %635 = vmatprep.subr.mxu0 0.0
        %636 = vmatpush1.xpose.msra.mxu0 0.0
        %637 = vmatprep.subr.mxu0 0.0
        %638 = vmatpush1.xpose.msra.mxu0 0.0
        %639 = vmatprep.subr.mxu0 0.0
        %640 = vmatpush1.xpose.msra.mxu0 0.0
        %641 = vmatprep.subr.mxu0 0.0
        %642 = vmatpush1.xpose.msra.mxu0 0.0
        %643 = vmatprep.subr.mxu0 0.0
        %644 = vmatpush1.xpose.msra.mxu0 0.0
        %645 = vmatprep.subr.mxu0 0.0
        %646 = vmatpush1.xpose.msra.mxu0 0.0
        %647 = vmatprep.subr.mxu0 0.0
        %648 = vmatpush1.xpose.msra.mxu0 0.0
        %649 = vmatprep.subr.mxu0 0.0
        %650 = vmatpush1.xpose.msra.mxu0 0.0
        %651 = vmatprep.subr.mxu0 0.0
        %652 = vmatpush1.xpose.msra.mxu0 0.0
        %653 = vmatprep.subr.mxu0 0.0
        %654 = vmatpush1.xpose.msra.mxu0 0.0
        %655 = vmatprep.mubr.f32.mxu0 0.0
        %656 = vmatmul.mubr.f32.gmra.mrb[0].mxu0 %v583
        %v657 = vpop.f32.mrb[0].mxu0
        %v658 = vadd.f32 0.0, %v657
        %v659 = vpop.f32.mrb[0].mxu0
        %660 = vmatprep.mubr.f32.mxu0 0.0
        %661 = vmatmul.mubr.f32.gmra.mrb[0].mxu0 %v586
        %v662 = vpop.f32.mrb[0].mxu0
        %v663 = vadd.f32 0.0, %v662
        %v664 = vpop.f32.mrb[0].mxu0
        %665 = vdwg.mxu0
        %vm666 = vcmask 64512
        %v667 = vsel %vm666, %v658, -inf
        %668 = vmax.xlane.f32.xlu0 %v667
        %v669 = vpop.xlane.xlu0 %668
        %v670 = vsel %vm666, %v663, -inf
        %671 = vmax.xlane.f32.xlu0 %v670
        %v672 = vpop.xlane.xlu0 %671
        %v673 = vsub.f32 %v658, %v669
        %v674 = vsub.f32 %v663, %v672
        %v675 = vmul.f32 %v673, 1.442695
        %v676 = vpow.pop %v675
        %v677 = vmul.f32 %v674, 1.442695
        %v678 = vpow.pop %v677
        %v679 = vsel %vm666, %v676, 0.0
        %680 = vadd.xlane.f32.xlu0 %v679
        %v681 = vpop.xlane.xlu0 %680
        %v682 = vsel %vm666, %v678, 0.0
        %683 = vadd.xlane.f32.xlu0 %v682
        %v684 = vpop.xlane.xlu0 %683
        %v685 = vrcp.pop %v681
        %v686 = vrcp.pop %v684
        %v687 = vmul.f32 %v676, %v685
        %v688 = vmul.f32 %v678, %v686
        %v689 = vld [vmem:[#allocation4] sm:$0xff]
        %v691 = vsel %vm666, %v687, 0
        %v694 = vsel %vm666, %v688, 0
        %696 = vmatprep.subr.mxu0 0.0
        %697 = vmatpush1.msra.mxu0 %v689
        %698 = vmatprep.subr.mxu0 0.0
        %699 = vmatpush1.msra.mxu0 0.0
        %700 = vmatprep.subr.mxu0 0.0
        %701 = vmatpush1.msra.mxu0 0.0
        %702 = vmatprep.subr.mxu0 0.0
        %703 = vmatpush1.msra.mxu0 0.0
        %704 = vmatprep.subr.mxu0 0.0
        %705 = vmatpush1.msra.mxu0 0.0
        %706 = vmatprep.subr.mxu0 0.0
        %707 = vmatpush1.msra.mxu0 0.0
        %708 = vmatprep.subr.mxu0 0.0
        %709 = vmatpush1.msra.mxu0 0.0
        %710 = vmatprep.subr.mxu0 0.0
        %711 = vmatpush1.msra.mxu0 0.0
        %712 = vmatprep.subr.mxu0 0.0
        %713 = vmatpush1.msra.mxu0 0.0
        %714 = vmatprep.subr.mxu0 0.0
        %715 = vmatpush1.msra.mxu0 0.0
        %716 = vmatprep.subr.mxu0 0.0
        %717 = vmatpush1.msra.mxu0 0.0
        %718 = vmatprep.subr.mxu0 0.0
        %719 = vmatpush1.msra.mxu0 0.0
        %720 = vmatprep.subr.mxu0 0.0
        %721 = vmatpush1.msra.mxu0 0.0
        %722 = vmatprep.subr.mxu0 0.0
        %723 = vmatpush1.msra.mxu0 0.0
        %724 = vmatprep.subr.mxu0 0.0
        %725 = vmatpush1.msra.mxu0 0.0
        %726 = vmatprep.subr.mxu0 0.0
        %727 = vmatpush1.msra.mxu0 0.0
        %728 = vmatprep.subr.mxu0 0.0
        %729 = vmatpush1.msra.mxu0 0.0
        %730 = vmatprep.subr.mxu0 0.0
        %731 = vmatpush1.msra.mxu0 0.0
        %732 = vmatprep.subr.mxu0 0.0
        %733 = vmatpush1.msra.mxu0 0.0
        %734 = vmatprep.subr.mxu0 0.0
        %735 = vmatpush1.msra.mxu0 0.0
        %736 = vmatprep.subr.mxu0 0.0
        %737 = vmatpush1.msra.mxu0 0.0
        %738 = vmatprep.subr.mxu0 0.0
        %739 = vmatpush1.msra.mxu0 0.0
        %740 = vmatprep.subr.mxu0 0.0
        %741 = vmatpush1.msra.mxu0 0.0
        %742 = vmatprep.subr.mxu0 0.0
        %743 = vmatpush1.msra.mxu0 0.0
        %744 = vmatprep.subr.mxu0 0.0
        %745 = vmatpush1.msra.mxu0 0.0
        %746 = vmatprep.subr.mxu0 0.0
        %747 = vmatpush1.msra.mxu0 0.0
        %748 = vmatprep.subr.mxu0 0.0
        %749 = vmatpush1.msra.mxu0 0.0
        %750 = vmatprep.subr.mxu0 0.0
        %751 = vmatpush1.msra.mxu0 0.0
        %752 = vmatprep.subr.mxu0 0.0
        %753 = vmatpush1.msra.mxu0 0.0
        %754 = vmatprep.subr.mxu0 0.0
        %755 = vmatpush1.msra.mxu0 0.0
        %756 = vmatprep.subr.mxu0 0.0
        %757 = vmatpush1.msra.mxu0 0.0
        %758 = vmatprep.subr.mxu0 0.0
        %759 = vmatpush1.msra.mxu0 0.0
        %760 = vmatprep.mubr.f32.mxu0 0.0
        %761 = vmatmul.mubr.f32.gmra.mrb[0].mxu0 %v691
        %v762 = vpop.f32.mrb[0].mxu0
        %v763 = vadd.f32 0.0, %v762
        %v764 = vpop.f32.mrb[0].mxu0
        %765 = vmatprep.mubr.f32.mxu0 0.0
        %766 = vmatmul.mubr.f32.gmra.mrb[0].mxu0 %v694
        %v767 = vpop.f32.mrb[0].mxu0
        %v768 = vadd.f32 0.0, %v767
        %v769 = vpop.f32.mrb[0].mxu0
        %770 = vdwg.mxu0
        %771 = vst.msk [vmem:[%s402] sm:$0xff] %vm581, %v763
        %772 = vst.msk [vmem:[%s402 + $0x8] sm:$0xff] %vm581, %v768
        %s773 = sand.u32 %s190, 1
        %s774 = scalar_lea.sflag [#allocation7], %s773
        %s775 = sand.u32 %s190, 1
        %s776 = smul.addr %s775, 16
        %s777 = scalar_lea.vmem [#allocation14], %s776
        // Predicated region
        $region69: #{tpu_custom_call.1} parent=39 // pred_check
          %p778 = pneg %p200
        $region70: #{tpu_custom_call.1} parent=39 // pred_check_branch
          %780 = sbr.rel (%p778) target = $region72
        $region71: #{tpu_custom_call.1} parent=39 // pred_region
          %s781 = smul.u32 2, %s33
          %s783 = ssub.s32 256, 256
          %784 = vsyncadd %s774, %s783
          %s785 = smul.addr %s32, 2
          %s786 = sadd.s32 %s781, %s785
          %s787 = smul.addr %s31, 4
          %s788 = sadd.s32 %s786, %s787
          %s789 = smul.addr %s788, 128
          %s790 = scalar_lea.hbm %s5, %s789
          %s791 = sshll.u32 %s777, 4
          %s792 = int_to_ptr.vmem [resolvable:$true] %s791
          %797 = dma.vmem_to_hbm [thread:$0]  %s792, 256, %s790, %s774, 128, 128, 8
        $region72: #{tpu_custom_call.1} parent=39 // pred_fallthru
          _
      $region40: #{tpu_custom_call.1} parent=5 // pred_fallthru
        _
      %p798 = scmp.le.s32.totalorder 2, %s21
      // Predicated region
      $region73: #{tpu_custom_call.1} parent=5 // pred_check
        %p799 = pneg %p798
      $region74: #{tpu_custom_call.1} parent=5 // pred_check_branch
        %801 = sbr.rel (%p799) target = $region76
      $region75: #{tpu_custom_call.1} parent=5 // pred_region
        %s802 = ssub.s32 %s21, 2
        // Predicated region
        $region77: #{tpu_custom_call.1} parent=75 // pred_check
          %p803 = pneg %p206
        $region78: #{tpu_custom_call.1} parent=75 // pred_check_branch
          %805 = sbr.rel (%p803) target = $region80
        $region79: #{tpu_custom_call.1} parent=75 // pred_region
          %s806 = sand.u32 %s191, 1
          %s807 = scalar_lea.sflag [#allocation7], %s806
          %s808 = sand.u32 %s191, 1
          %s809 = smul.addr %s808, 16
          %s810 = scalar_lea.vmem [#allocation14], %s809
          %811 = dma.done %s807, 256
        $region80: #{tpu_custom_call.1} parent=75 // pred_fallthru
          _
      $region76: #{tpu_custom_call.1} parent=5 // pred_fallthru
        _
    $region6: #{tpu_custom_call.1} parent=1 // loop_footer
      %s25 = sadd.s32 1, %s21
    $region7: #{tpu_custom_call.1} parent=1 // loop_footer_branch
      %20 = sbr.rel target = $region3
    $region8: #{tpu_custom_call.1} parent=1 // loop_exit
      _
    %812 = vsyncpa [#allocation6], 1
    %s813 = scalar_lea.sflag [#allocation6], 1
    %814 = vsyncpa %s813, 1
    %815 = vsyncpa [#allocation9], 1
    %s816 = scalar_lea.sflag [#allocation9], 1
    %817 = vsyncpa %s816, 1
    %818 = vsyncpa [#allocation12], 1
    %s819 = scalar_lea.sflag [#allocation12], 1
    %820 = vsyncpa %s819, 1
    %821 = vsyncpa [#allocation7], 1
    %s822 = scalar_lea.sflag [#allocation7], 1
    %823 = vsyncpa %s822, 1

</llo_original>
